<compile_context>
chip_gen: v5e
topology: v5e:2x2
jax: 0.10.0
libtpu: 0.0.40
codegen_flags: <defaults>
</compile_context>

<pallas_src>
import functools

import jax
import jax.numpy as jnp
from jax import lax
from jax.experimental import pallas as pl
from jax.experimental.pallas import tpu as pltpu


_NUM_PARAMS = 6   # weight, bias, dynamic_weight_scale, dynamic_bias_scale, time_freq, time_phase
_PARAM_ROWS = 8   # padded to a full sublane tile


def _round_up(x, m):
    return (x + m - 1) // m * m


def _liquid_ln_kernel(step_ref,   # SMEM scalar-prefetch: (1,) int32
                      x_ref,      # (TILE_R, H) input tile
                      p_ref,      # (8, H) packed parameters (rows 0..5 used)
                      o_ref,      # (TILE_R, H) output tile
                      *, eps):
    step_f = step_ref[0].astype(jnp.float32)

    # Dynamic ("liquid") parameter update -- (1, H)-sized work, negligible per tile.
    w   = p_ref[0:1, :]
    b   = p_ref[1:2, :]
    dws = p_ref[2:3, :]
    dbs = p_ref[3:4, :]
    tf  = p_ref[4:5, :]
    tp  = p_ref[5:6, :]
    time_factor = jnp.sin(step_f * tf + tp)                 # (1, H)
    dyn_w = w + dws * time_factor                           # (1, H)
    dyn_b = b + dbs * jnp.sin(step_f * 0.01)                # (1, H)

    # LayerNorm over the hidden (lane) axis, biased variance, f32 accumulation.
    x = x_ref[...].astype(jnp.float32)                      # (R, H)
    mean = jnp.mean(x, axis=-1, keepdims=True)              # (R, 1)
    xc = x - mean
    var = jnp.mean(xc * xc, axis=-1, keepdims=True)         # (R, 1)
    normalized = xc * lax.rsqrt(var + eps)

    o_ref[...] = (dyn_w * normalized + dyn_b).astype(o_ref.dtype)


def liquid_layer_norm(hidden_states, params, step=0, *, eps=1e-12, tile_rows=512):
    """hidden_states: (B, S, H) float array (f32 or bf16). params: dict of (H,) arrays."""
    B, S, H = hidden_states.shape
    rows = B * S
    dtype = hidden_states.dtype
    itemsize = jnp.dtype(dtype).itemsize
    sub = 16 if itemsize == 2 else 8   # sublane granularity (bf16 packs 2 rows/sublane)

    # Adapt tile size: multiple of `sub`, no bigger than the (rounded-up) row count,
    # and capped so double-buffered in+out tiles stay well inside scoped VMEM on all
    # generations (incl. v7x's 64 MiB physical VMEM).
    tile_rows = max(sub, min(int(tile_rows), _round_up(rows, sub)))
    tile_rows = _round_up(tile_rows, sub)
    max_tile_bytes = 8 << 20          # per-tile cap -> 2*(in+out) <= ~32 MiB
    while tile_rows > sub and tile_rows * H * itemsize > max_tile_bytes:
        tile_rows //= 2
    tile_rows = max(sub, _round_up(tile_rows, sub))

    padded_rows = _round_up(rows, tile_rows)
    x2d = hidden_states.reshape(rows, H)
    if padded_rows != rows:
        x2d = jnp.pad(x2d, ((0, padded_rows - rows), (0, 0)))

    # Pack the six (H,) parameters into one (8, H) slab -> single resident VMEM block.
    p = jnp.stack(
        [params["weight"], params["bias"],
         params["dynamic_weight_scale"], params["dynamic_bias_scale"],
         params["time_freq"], params["time_phase"]],
        axis=0).astype(jnp.float32)
    p = jnp.pad(p, ((0, _PARAM_ROWS - _NUM_PARAMS), (0, 0)))

    step_arr = jnp.asarray([step], dtype=jnp.int32)

    row_spec = pl.BlockSpec((tile_rows, H), lambda i, step_ref: (i, 0))
    par_spec = pl.BlockSpec((_PARAM_ROWS, H), lambda i, step_ref: (0, 0))

    # Explicit VMEM budget: double-buffered in/out tiles + param slab + slack.
    tile_bytes = tile_rows * H * itemsize
    vmem_bytes = 2 * 2 * tile_bytes + 2 * _PARAM_ROWS * H * 4 + (4 << 20)
    vmem_bytes = int(min(max(vmem_bytes, 16 << 20), 48 << 20))

    out2d = pl.pallas_call(
        functools.partial(_liquid_ln_kernel, eps=eps),
        out_shape=jax.ShapeDtypeStruct((padded_rows, H), dtype),
        grid_spec=pltpu.PrefetchScalarGridSpec(
            num_scalar_prefetch=1,
            grid=(padded_rows // tile_rows,),
            in_specs=[row_spec, par_spec],
            out_specs=row_spec,
        ),
        compiler_params=pltpu.CompilerParams(
            dimension_semantics=("parallel",),
            vmem_limit_bytes=vmem_bytes),
    )(step_arr, x2d, p)

    if padded_rows != rows:
        out2d = out2d[:rows]
    return out2d.reshape(B, S, H)


def init_params(hidden_size, key):
    """Deterministic parameter init matching LiquidLayerNorm.__init__ shapes."""
    k1, k2 = jax.random.split(key)
    return {
        "weight": jnp.ones((hidden_size,), jnp.float32),
        "bias": jnp.zeros((hidden_size,), jnp.float32),
        "dynamic_weight_scale": jnp.ones((hidden_size,), jnp.float32) * 0.01,
        "dynamic_bias_scale": jnp.ones((hidden_size,), jnp.float32) * 0.01,
        "time_freq": jax.random.normal(k1, (hidden_size,), jnp.float32) * 0.01,
        "time_phase": jax.random.normal(k2, (hidden_size,), jnp.float32) * 0.01,
    }


def liquid_layer_norm_ref(hidden_states, params, step=0, eps=1e-12):
    """Pure-JAX reference mirroring the PyTorch forward."""
    time_factor = jnp.sin(step * params["time_freq"] + params["time_phase"])
    w = params["weight"] + params["dynamic_weight_scale"] * time_factor
    b = params["bias"] + params["dynamic_bias_scale"] * jnp.sin(step * 0.01)
    mean = hidden_states.mean(-1, keepdims=True)
    var = ((hidden_states - mean) ** 2).mean(-1, keepdims=True)
    normalized = (hidden_states - mean) / jnp.sqrt(var + eps)
    return w * normalized + b


if __name__ == "__main__":
    key = jax.random.PRNGKey(0)
    kx, kp, kx2 = jax.random.split(key, 3)

    # Test 1: small f32 case.
    B, S, H = 2, 8, 128
    step = 7
    x = jax.random.normal(kx, (B, S, H), jnp.float32)
    params = init_params(H, kp)
    out = jax.block_until_ready(liquid_layer_norm(x, params, step=step))
    ref = liquid_layer_norm_ref(x, params, step=step)
    assert out.shape == (B, S, H)
    assert jnp.allclose(out, ref, atol=1e-5, rtol=1e-5), "f32 mismatch vs reference"

    # Test 2: rows not a multiple of the tile (exercises pad/trim) + multi-tile grid.
    B2, S2, H2 = 3, 37, 256
    x2 = jax.random.normal(kx2, (B2, S2, H2), jnp.float32)
    params2 = init_params(H2, jax.random.fold_in(kp, 1))
    out2 = jax.block_until_ready(liquid_layer_norm(x2, params2, step=3, tile_rows=64))
    ref2 = liquid_layer_norm_ref(x2, params2, step=3)
    assert out2.shape == (B2, S2, H2)
    assert jnp.allclose(out2, ref2, atol=1e-5, rtol=1e-5), "ragged-rows mismatch vs reference"

    # Test 3: bf16 I/O (halved HBM traffic), f32 accumulation inside the kernel.
    xb = x.astype(jnp.bfloat16)
    outb = jax.block_until_ready(liquid_layer_norm(xb, params, step=step))
    refb = liquid_layer_norm_ref(xb.astype(jnp.float32), params, step=step)
    assert outb.dtype == jnp.bfloat16
    assert jnp.allclose(outb.astype(jnp.float32), refb, atol=1e-1, rtol=1e-1), "bf16 mismatch"

    print("KERNEL_OK")
</pallas_src>

<mosaic_0001>
module attributes {stable_mosaic.version = 11 : i64} {
  func.func @_liquid_ln_kernel(%arg0: i32, %arg1: memref<1xi32, #tpu.memory_space<smem>>, %arg2: memref<16x128xf32, #tpu.memory_space<vmem>>, %arg3: memref<8x128xf32, #tpu.memory_space<vmem>>, %arg4: memref<16x128xf32, #tpu.memory_space<vmem>>) attributes {dimension_semantics = [#tpu.dimension_semantics<parallel>], iteration_bounds = array<i64: 1>, scalar_prefetch = 1 : i64, scratch_operands = 0 : i64, tpu.core_type = #tpu.core_type<tc>, window_params = [{transform_indices = @transform_0, window_bounds = array<i64: 16, 128>}, {pipeline_mode = #tpu.pipeline_mode<synchronous>, transform_indices = @transform_1, window_bounds = array<i64: 8, 128>}, {transform_indices = @transform_2, window_bounds = array<i64: 16, 128>}]} {
    %c0 = arith.constant 0 : index
    %0 = memref.load %arg1[%c0] : memref<1xi32, #tpu.memory_space<smem>>
    %1 = arith.sitofp %0 : i32 to f32
    %c0_0 = arith.constant 0 : index
    %c0_1 = arith.constant 0 : index
    %2 = vector.load %arg3[%c0_0, %c0_1] : memref<8x128xf32, #tpu.memory_space<vmem>>, vector<1x128xf32>
    %c1 = arith.constant 1 : index
    %c0_2 = arith.constant 0 : index
    %3 = vector.load %arg3[%c1, %c0_2] : memref<8x128xf32, #tpu.memory_space<vmem>>, vector<1x128xf32>
    %c2 = arith.constant 2 : index
    %c0_3 = arith.constant 0 : index
    %4 = vector.load %arg3[%c2, %c0_3] : memref<8x128xf32, #tpu.memory_space<vmem>>, vector<1x128xf32>
    %c3 = arith.constant 3 : index
    %c0_4 = arith.constant 0 : index
    %5 = vector.load %arg3[%c3, %c0_4] : memref<8x128xf32, #tpu.memory_space<vmem>>, vector<1x128xf32>
    %c4 = arith.constant 4 : index
    %c0_5 = arith.constant 0 : index
    %6 = vector.load %arg3[%c4, %c0_5] : memref<8x128xf32, #tpu.memory_space<vmem>>, vector<1x128xf32>
    %c5 = arith.constant 5 : index
    %c0_6 = arith.constant 0 : index
    %7 = vector.load %arg3[%c5, %c0_6] : memref<8x128xf32, #tpu.memory_space<vmem>>, vector<1x128xf32>
    %8 = vector.broadcast %1 : f32 to vector<1x128xf32>
    %9 = arith.mulf %8, %6 : vector<1x128xf32>
    %10 = arith.addf %9, %7 : vector<1x128xf32>
    %11 = math.sin %10 : vector<1x128xf32>
    %12 = arith.mulf %4, %11 : vector<1x128xf32>
    %13 = arith.addf %2, %12 : vector<1x128xf32>
    %cst = arith.constant 0.00999999977 : f32
    %14 = arith.mulf %1, %cst : f32
    %15 = math.sin %14 : f32
    %16 = vector.broadcast %15 : f32 to vector<1x128xf32>
    %17 = arith.mulf %5, %16 : vector<1x128xf32>
    %18 = arith.addf %3, %17 : vector<1x128xf32>
    %c0_7 = arith.constant 0 : index
    %c0_8 = arith.constant 0 : index
    %19 = vector.load %arg2[%c0_7, %c0_8] : memref<16x128xf32, #tpu.memory_space<vmem>>, vector<16x128xf32>
    %cst_9 = arith.constant dense<0.000000e+00> : vector<16xf32>
    %20 = vector.multi_reduction <add>, %19, %cst_9 [1] : vector<16x128xf32> to vector<16xf32>
    %21 = vector.shape_cast %20 : vector<16xf32> to vector<16x1xf32>
    %cst_10 = arith.constant 1.280000e+02 : f32
    %22 = vector.broadcast %cst_10 : f32 to vector<16x1xf32>
    %23 = arith.divf %21, %22 : vector<16x1xf32>
    %24 = vector.broadcast %23 : vector<16x1xf32> to vector<16x128xf32>
    %25 = arith.subf %19, %24 : vector<16x128xf32>
    %26 = arith.mulf %25, %25 : vector<16x128xf32>
    %cst_11 = arith.constant dense<0.000000e+00> : vector<16xf32>
    %27 = vector.multi_reduction <add>, %26, %cst_11 [1] : vector<16x128xf32> to vector<16xf32>
    %28 = vector.shape_cast %27 : vector<16xf32> to vector<16x1xf32>
    %cst_12 = arith.constant 1.280000e+02 : f32
    %29 = vector.broadcast %cst_12 : f32 to vector<16x1xf32>
    %30 = arith.divf %28, %29 : vector<16x1xf32>
    %cst_13 = arith.constant 9.99999996E-13 : f32
    %31 = vector.broadcast %cst_13 : f32 to vector<16x1xf32>
    %32 = arith.addf %30, %31 : vector<16x1xf32>
    %33 = math.rsqrt %32 : vector<16x1xf32>
    %34 = vector.broadcast %33 : vector<16x1xf32> to vector<16x128xf32>
    %35 = arith.mulf %25, %34 : vector<16x128xf32>
    %36 = vector.broadcast %13 : vector<1x128xf32> to vector<16x128xf32>
    %37 = arith.mulf %36, %35 : vector<16x128xf32>
    %38 = vector.broadcast %18 : vector<1x128xf32> to vector<16x128xf32>
    %39 = arith.addf %37, %38 : vector<16x128xf32>
    %c0_14 = arith.constant 0 : index
    %c0_15 = arith.constant 0 : index
    %40 = vector.load %arg4[%c0_14, %c0_15] : memref<16x128xf32, #tpu.memory_space<vmem>>, vector<16x128xf32>
    tpu.vector_store %arg4[%c0_14, %c0_15], %39 {strides = array<i32>} : memref<16x128xf32, #tpu.memory_space<vmem>>, vector<16x128xf32>,
    return
  }
  func.func @transform_0(%arg0: i32, %arg1: memref<1xi32, #tpu.memory_space<smem>>) -> (i32, i32) {
    %c0_i32 = arith.constant 0 : i32
    %c0_i32_0 = arith.constant 0 : i32
    return %arg0, %c0_i32 : i32, i32
  }
  func.func @transform_1(%arg0: i32, %arg1: memref<1xi32, #tpu.memory_space<smem>>) -> (i32, i32) {
    %c0_i32 = arith.constant 0 : i32
    %c0_i32_0 = arith.constant 0 : i32
    %c0_i32_1 = arith.constant 0 : i32
    return %c0_i32, %c0_i32_0 : i32, i32
  }
  func.func @transform_2(%arg0: i32, %arg1: memref<1xi32, #tpu.memory_space<smem>>) -> (i32, i32) {
    %c0_i32 = arith.constant 0 : i32
    %c0_i32_0 = arith.constant 0 : i32
    return %arg0, %c0_i32 : i32, i32
  }
}

</mosaic_0001>

<llo_original>
// kernel: tpu_custom_call.1
$region0: #{tpu_custom_call.1}
  #allocation0 [shape = 'u32[]', space=smem, size = 0x4, offset = 0x4, fixed_abs, tag = 'smem constant byte address 0x4 - core index']
  #allocation1 [shape = 'u32[72,128]{1,0:T(1,128)}', space=vmem, size = 0x9000, scoped, tag = 'internal scratch']
  #allocation2 [shape = 's32[1]{0}', space=sflag, size = 0x4, scoped, tag = 'scoped memory for tpu_custom_call.1']
  #allocation3 [shape = 's32[1]{0:T(128)S(6)}', space=smem, size = 0x200, scoped, tag = 'prefetched SMEM operand 0']
  %s0 = inlined_call_operand.<no memory space> [shape: s32[1], index: 0, kind: input, shape index: {}]
  %s1 = inlined_call_operand.hbm [shape: f32[16,128], index: 1, kind: input, shape index: {}]
  %s2 = inlined_call_operand.hbm [shape: f32[8,128], index: 2, kind: input, shape index: {}]
  %s3 = inlined_call_operand.hbm [shape: f32[16,128], index: 3, kind: output, shape index: {}]
  %s4 = sld [smem:[#allocation0]]
  $region26: #{tpu_custom_call.1} parent=0
    _
  %s6 = ssub.s32 1, %s4
  %s7 = scalar_select 0, %s6, %s4
  %8 = sst [smem:[#allocation3]] %s0
  $region1: #{tpu_custom_call.1} parent=0
    #allocation4 [shape = 'u8[8192]{0}', space=vmem, size = 0x2000, scoped, tag = 'input window, operand 1, single buffered']
    #allocation5 [shape = 's32[1]{0}', space=sflag, size = 0x4, scoped, tag = 'scoped memory for tpu_custom_call.1']
    #allocation6 [shape = 's32[1]{0}', space=sflag, size = 0x4, scoped, tag = 'scoped memory for tpu_custom_call.1']
    #allocation7 [shape = 'u8[4096]{0}', space=vmem, size = 0x1000, scoped, tag = 'input window, operand 2, single buffered']
    #allocation8 [shape = 's32[1]{0}', space=sflag, size = 0x4, scoped, tag = 'scoped memory for tpu_custom_call.1']
    #allocation9 [shape = 'u8[8192]{0}', space=vmem, size = 0x2000, scoped, tag = 'output window, operand 0, single buffered']
    %9 = vsyncpa [#allocation5], 0
    %10 = vsyncpa [#allocation8], 0
    %11 = vsyncpa [#allocation6], 0
    // Predicated region
    $region2: #{tpu_custom_call.1} parent=1 // pred_check
      _
    $region3: #{tpu_custom_call.1} parent=1 // pred_check_branch
      %13 = sbr.rel (0) target = $region5
    $region4: #{tpu_custom_call.1} parent=1 // pred_region
      %15 = vsyncadd [#allocation5], 0
      %s16 = sshll.u32 %s1, 4
      %s17 = int_to_ptr.hbm [resolvable:$true] %s16
      %s18 = sshll.u32 [#allocation4], 4
      %s19 = int_to_ptr.vmem [resolvable:$true] %s18
      %24 = dma.hbm_to_vmem [thread:$0]  %s17, 256, %s19, [#allocation5], 128, 128, 8
    $region5: #{tpu_custom_call.1} parent=1 // pred_fallthru
      _
    // Predicated region
    $region6: #{tpu_custom_call.1} parent=1 // pred_check
      _
    $region7: #{tpu_custom_call.1} parent=1 // pred_check_branch
      %26 = sbr.rel (0) target = $region9
    $region8: #{tpu_custom_call.1} parent=1 // pred_region
      %28 = vsyncadd [#allocation8], 0
      %s30 = sshll.u32 %s2, 4
      %s31 = int_to_ptr.hbm [resolvable:$true] %s30
      %s32 = sshll.u32 [#allocation7], 4
      %s33 = int_to_ptr.vmem [resolvable:$true] %s32
      %35 = dma.hbm_to_vmem [thread:$0]  %s31, 128, %s33, [#allocation8]
    $region9: #{tpu_custom_call.1} parent=1 // pred_fallthru
      _
    // Predicated region
    $region10: #{tpu_custom_call.1} parent=1 // pred_check
      _
    $region11: #{tpu_custom_call.1} parent=1 // pred_check_branch
      %37 = sbr.rel (0) target = $region13
    $region12: #{tpu_custom_call.1} parent=1 // pred_region
      %39 = dma.done [#allocation5], 256
    $region13: #{tpu_custom_call.1} parent=1 // pred_fallthru
      _
    // Predicated region
    $region14: #{tpu_custom_call.1} parent=1 // pred_check
      _
    $region15: #{tpu_custom_call.1} parent=1 // pred_check_branch
      %41 = sbr.rel (0) target = $region17
    $region16: #{tpu_custom_call.1} parent=1 // pred_region
      %43 = dma.done [#allocation8], 128
    $region17: #{tpu_custom_call.1} parent=1 // pred_fallthru
      _
    %s44 = sld [smem:[#allocation3]]
    %s45 = scvt.s32.f32 %s44
    %v46 = vld [vmem:[#allocation7] sm:$0x1]
    %v47 = vld [vmem:[#allocation7 + $0x1] sm:$0x1]
    %v48 = vld [vmem:[#allocation7 + $0x2] sm:$0x1]
    %v49 = vld [vmem:[#allocation7 + $0x3] sm:$0x1]
    %v50 = vld [vmem:[#allocation7 + $0x4] sm:$0x1]
    %v51 = vld [vmem:[#allocation7 + $0x5] sm:$0x1]
    %v52 = vstv %s45
    %v53 = vmul.f32 %v52, %v50
    %v54 = vadd.f32 %v53, %v51
    %v55 = vand.u32 2147483647, %v54
    %vm56 = vcmp.le.f32.partialorder %v55, 0.7853982
    %vm57 = vcmp.lt.s32.totalorder %v54, 0
    %v58 = vand.u32 %v54, 2139095040
    %v59 = vshrl.u32 %v58, 23
    %v60 = vsub.s32 %v59, 127
    %v61 = vand.u32 2147483647, %v54
    %v62 = vand.u32 %v61, 8388607
    %v63 = vor.u32 %v62, 8388608
    %v64 = vsub.s32 0, %v63
    %v65 = vadd.s32 %v60, 1
    %vm66 = vcmp.gt.s32.totalorder %v65, 0
    %v67 = vsel %vm66, %v65, 0
    %v68 = vshrl.u32 %v67, 5
    %v69 = vand.u32 %v67, 31
    %v70 = vsub.s32 32, %v69
    %v71 = vshrl.u32 683565275, %v70
    %v72 = vshll.u32 683565275, %v69
    %v73 = vshrl.u32 2475754826, %v70
    %v74 = vor.u32 %v72, %v73
    %v75 = vshll.u32 2475754826, %v69
    %v76 = vshrl.u32 2131351028, %v70
    %v77 = vor.u32 %v75, %v76
    %v78 = vshll.u32 2131351028, %v69
    %v79 = vshrl.u32 2102212464, %v70
    %v80 = vor.u32 %v78, %v79
    %v81 = vshll.u32 2102212464, %v69
    %v82 = vshrl.u32 920167782, %v70
    %v83 = vor.u32 %v81, %v82
    %v84 = vshll.u32 920167782, %v69
    %v85 = vshrl.u32 1326507024, %v70
    %v86 = vor.u32 %v84, %v85
    %vm87 = vcmp.lt.s32.totalorder %v68, 1
    %vm88 = vcmp.lt.s32.totalorder %v68, 2
    %vm89 = vcmp.lt.s32.totalorder %v68, 3
    %vm90 = vcmp.lt.s32.totalorder %v68, 4
    %v91 = vsel %vm87, %v71, %v74
    %v92 = vsel %vm90, %v80, 2102212464
    %v93 = vsel %vm89, %v77, %v92
    %v94 = vsel %vm88, %v91, %v93
    %v95 = vsel %vm87, %v74, %v77
    %v96 = vsel %vm90, %v83, 920167782
    %v97 = vsel %vm89, %v80, %v96
    %v98 = vsel %vm88, %v95, %v97
    %v99 = vsel %vm87, %v77, %v80
    %v100 = vsel %vm90, %v86, 1326507024
    %v101 = vsel %vm89, %v83, %v100
    %v102 = vsel %vm88, %v99, %v101
    %v103 = vshll.u32 %v63, 8
    %v104 = vand.u32 %v103, 65535
    %v105 = vshrl.u32 %v103, 16
    %v106 = vand.u32 %v102, 65535
    %v107 = vshrl.u32 %v102, 16
    %v108 = vmul.u32 %v104, %v106
    %v109 = vmul.u32 %v104, %v107
    %v110 = vmul.u32 %v105, %v106
    %v111 = vmul.u32 %v105, %v107
    %v112 = vshll.u32 %v109, 16
    %v113 = vshrl.u32 %v109, 16
    %v114 = vshll.u32 %v110, 16
    %v115 = vshrl.u32 %v110, 16
    %vm116 = vc.u32 %v108, %v112
    %v117 = vsel %vm116, 1, 0
    %v118 = vadd.s32 %v108, %v112
    %v119 = vadd.s32 %v111, %v117
    %vm120 = vc.u32 %v118, %v114
    %v121 = vsel %vm120, 1, 0
    %v122 = vadd.s32 %v118, %v114
    %v123 = vadd.s32 %v119, %v121
    %v124 = vadd.s32 %v123, %v113
    %v125 = vadd.s32 %v124, %v115
    %v126 = vand.u32 %v103, 65535
    %v127 = vshrl.u32 %v103, 16
    %v128 = vand.u32 %v98, 65535
    %v129 = vshrl.u32 %v98, 16
    %v130 = vmul.u32 %v126, %v128
    %v131 = vmul.u32 %v126, %v129
    %v132 = vmul.u32 %v127, %v128
    %v133 = vmul.u32 %v127, %v129
    %v134 = vshll.u32 %v131, 16
    %v135 = vshrl.u32 %v131, 16
    %v136 = vshll.u32 %v132, 16
    %v137 = vshrl.u32 %v132, 16
    %vm138 = vc.u32 %v130, %v134
    %v139 = vsel %vm138, 1, 0
    %v140 = vadd.s32 %v130, %v134
    %v141 = vadd.s32 %v133, %v139
    %vm142 = vc.u32 %v140, %v136
    %v143 = vsel %vm142, 1, 0
    %v144 = vadd.s32 %v140, %v136
    %v145 = vadd.s32 %v141, %v143
    %v146 = vadd.s32 %v145, %v135
    %v147 = vadd.s32 %v146, %v137
    %v148 = vmul.u32 %v103, %v94
    %v149 = vadd.s32 %v125, %v144
    %vm150 = vc.u32 %v125, %v144
    %v151 = vadd.s32 %v147, 1
    %v152 = vsel %vm150, %v151, %v147
    %v153 = vadd.s32 %v148, %v152
    %v154 = vadd.s32 %v153, 536870912
    %v155 = vshrl.u32 %v154, 30
    %v156 = vshll.u32 %v155, 30
    %v157 = vsub.s32 %v153, %v156
    %vm158 = vcmp.lt.s32.totalorder %v157, 0
    %v159 = vsub.s32 0, %v157
    %v160 = vsel %vm158, %v159, %v157
    %v161 = vclz %v160
    %v162 = vsub.s32 %v161, 2
    %vm163 = vcmp.gt.s32.totalorder 0, %v162
    %v164 = vsel %vm163, 0, %v162
    %v165 = vsub.s32 32, %v164
    %v166 = vshll.u32 %v157, %v164
    %v167 = vshrl.u32 %v149, %v165
    %v168 = vor.u32 %v166, %v167
    %v169 = vsub.s32 4294967266, %v164
    %v170 = vadd.s32 %v169, 127
    %v171 = vshll.u32 %v170, 23
    %v172 = vor.u32 4788187, %v171
    %v173 = vand.u32 2147483647, %v172
    %v175 = vcvt.s32.f32 %v168
    %v176 = vmul.f32 %v175, %v173
    %v177 = vxor.u32 %v176, 2147483648
    %v178 = vsel %vm57, %v177, %v176
    %v179 = vsub.s32 4, %v155
    %v180 = vsel %vm57, %v179, %v155
    %v181 = vsel %vm56, %v54, %v178
    %v182 = vsel %vm56, 0, %v180
    %v183 = vmul.f32 %v181, %v181
    %v184 = vmul.f32 %v183, -0.001358992
    %v185 = vadd.f32 %v184, 0.041655596
    %v186 = vmul.f32 %v183, %v185
    %v187 = vadd.f32 %v186, -0.4999988
    %v188 = vmul.f32 %v183, %v187
    %v189 = vadd.f32 1.0, %v188
    %v190 = vmul.f32 %v181, %v181
    %v191 = vmul.f32 %v190, -0.00019511016
    %v192 = vadd.f32 %v191, 0.008332121
    %v193 = vmul.f32 %v190, %v192
    %v194 = vadd.f32 %v193, -0.16666654
    %v195 = vmul.f32 %v190, %v194
    %v196 = vadd.f32 %v195, 1.0
    %v197 = vmul.f32 %v196, %v181
    %vm198 = vweird.f32 %v54
    %v199 = vadd.s32 %v182, 3
    %v200 = vand.u32 %v199, 3
    %vm201 = vcmp.lt.s32.totalorder %v200, 2
    %vm202 = vcmp.eq.s32.totalorder %v200, 0
    %v203 = vxor.u32 %v197, 2147483648
    %v204 = vsel %vm202, %v189, %v203
    %vm205 = vcmp.eq.s32.totalorder %v200, 2
    %v206 = vxor.u32 %v189, 2147483648
    %v207 = vsel %vm205, %v206, %v197
    %v208 = vsel %vm201, %v204, %v207
    %v209 = vsel %vm198, nan, %v208
    %v210 = vmul.f32 %v48, %v209
    %v211 = vadd.f32 %v46, %v210
    %s212 = smul.f32 %s45, 0.01
    %v213 = vstv %s212
    %v214 = vand.u32 2147483647, %v213
    %vm215 = vcmp.le.f32.partialorder %v214, 0.7853982
    %vm216 = vcmp.lt.s32.totalorder %v213, 0
    %v217 = vand.u32 %v213, 2139095040
    %v218 = vshrl.u32 %v217, 23
    %v219 = vsub.s32 %v218, 127
    %v220 = vand.u32 2147483647, %v213
    %v221 = vand.u32 %v220, 8388607
    %v222 = vor.u32 %v221, 8388608
    %v223 = vsub.s32 0, %v222
    %v224 = vadd.s32 %v219, 1
    %vm225 = vcmp.gt.s32.totalorder %v224, 0
    %v226 = vsel %vm225, %v224, 0
    %v227 = vshrl.u32 %v226, 5
    %v228 = vand.u32 %v226, 31
    %v229 = vsub.s32 32, %v228
    %v230 = vshrl.u32 683565275, %v229
    %v231 = vshll.u32 683565275, %v228
    %v232 = vshrl.u32 2475754826, %v229
    %v233 = vor.u32 %v231, %v232
    %v234 = vshll.u32 2475754826, %v228
    %v235 = vshrl.u32 2131351028, %v229
    %v236 = vor.u32 %v234, %v235
    %v237 = vshll.u32 2131351028, %v228
    %v238 = vshrl.u32 2102212464, %v229
    %v239 = vor.u32 %v237, %v238
    %v240 = vshll.u32 2102212464, %v228
    %v241 = vshrl.u32 920167782, %v229
    %v242 = vor.u32 %v240, %v241
    %v243 = vshll.u32 920167782, %v228
    %v244 = vshrl.u32 1326507024, %v229
    %v245 = vor.u32 %v243, %v244
    %vm246 = vcmp.lt.s32.totalorder %v227, 1
    %vm247 = vcmp.lt.s32.totalorder %v227, 2
    %vm248 = vcmp.lt.s32.totalorder %v227, 3
    %vm249 = vcmp.lt.s32.totalorder %v227, 4
    %v250 = vsel %vm246, %v230, %v233
    %v251 = vsel %vm249, %v239, 2102212464
    %v252 = vsel %vm248, %v236, %v251
    %v253 = vsel %vm247, %v250, %v252
    %v254 = vsel %vm246, %v233, %v236
    %v255 = vsel %vm249, %v242, 920167782
    %v256 = vsel %vm248, %v239, %v255
    %v257 = vsel %vm247, %v254, %v256
    %v258 = vsel %vm246, %v236, %v239
    %v259 = vsel %vm249, %v245, 1326507024
    %v260 = vsel %vm248, %v242, %v259
    %v261 = vsel %vm247, %v258, %v260
    %v262 = vshll.u32 %v222, 8
    %v263 = vand.u32 %v262, 65535
    %v264 = vshrl.u32 %v262, 16
    %v265 = vand.u32 %v261, 65535
    %v266 = vshrl.u32 %v261, 16
    %v267 = vmul.u32 %v263, %v265
    %v268 = vmul.u32 %v263, %v266
    %v269 = vmul.u32 %v264, %v265
    %v270 = vmul.u32 %v264, %v266
    %v271 = vshll.u32 %v268, 16
    %v272 = vshrl.u32 %v268, 16
    %v273 = vshll.u32 %v269, 16
    %v274 = vshrl.u32 %v269, 16
    %vm275 = vc.u32 %v267, %v271
    %v276 = vsel %vm275, 1, 0
    %v277 = vadd.s32 %v267, %v271
    %v278 = vadd.s32 %v270, %v276
    %vm279 = vc.u32 %v277, %v273
    %v280 = vsel %vm279, 1, 0
    %v281 = vadd.s32 %v277, %v273
    %v282 = vadd.s32 %v278, %v280
    %v283 = vadd.s32 %v282, %v272
    %v284 = vadd.s32 %v283, %v274
    %v285 = vand.u32 %v262, 65535
    %v286 = vshrl.u32 %v262, 16
    %v287 = vand.u32 %v257, 65535
    %v288 = vshrl.u32 %v257, 16
    %v289 = vmul.u32 %v285, %v287
    %v290 = vmul.u32 %v285, %v288
    %v291 = vmul.u32 %v286, %v287
    %v292 = vmul.u32 %v286, %v288
    %v293 = vshll.u32 %v290, 16
    %v294 = vshrl.u32 %v290, 16
    %v295 = vshll.u32 %v291, 16
    %v296 = vshrl.u32 %v291, 16
    %vm297 = vc.u32 %v289, %v293
    %v298 = vsel %vm297, 1, 0
    %v299 = vadd.s32 %v289, %v293
    %v300 = vadd.s32 %v292, %v298
    %vm301 = vc.u32 %v299, %v295
    %v302 = vsel %vm301, 1, 0
    %v303 = vadd.s32 %v299, %v295
    %v304 = vadd.s32 %v300, %v302
    %v305 = vadd.s32 %v304, %v294
    %v306 = vadd.s32 %v305, %v296
    %v307 = vmul.u32 %v262, %v253
    %v308 = vadd.s32 %v284, %v303
    %vm309 = vc.u32 %v284, %v303
    %v310 = vadd.s32 %v306, 1
    %v311 = vsel %vm309, %v310, %v306
    %v312 = vadd.s32 %v307, %v311
    %v313 = vadd.s32 %v312, 536870912
    %v314 = vshrl.u32 %v313, 30
    %v315 = vshll.u32 %v314, 30
    %v316 = vsub.s32 %v312, %v315
    %vm317 = vcmp.lt.s32.totalorder %v316, 0
    %v318 = vsub.s32 0, %v316
    %v319 = vsel %vm317, %v318, %v316
    %v320 = vclz %v319
    %v321 = vsub.s32 %v320, 2
    %vm322 = vcmp.gt.s32.totalorder 0, %v321
    %v323 = vsel %vm322, 0, %v321
    %v324 = vsub.s32 32, %v323
    %v325 = vshll.u32 %v316, %v323
    %v326 = vshrl.u32 %v308, %v324
    %v327 = vor.u32 %v325, %v326
    %v328 = vsub.s32 4294967266, %v323
    %v329 = vadd.s32 %v328, 127
    %v330 = vshll.u32 %v329, 23
    %v331 = vor.u32 4788187, %v330
    %v332 = vand.u32 2147483647, %v331
    %v334 = vcvt.s32.f32 %v327
    %v335 = vmul.f32 %v334, %v332
    %v336 = vxor.u32 %v335, 2147483648
    %v337 = vsel %vm216, %v336, %v335
    %v338 = vsub.s32 4, %v314
    %v339 = vsel %vm216, %v338, %v314
    %v340 = vsel %vm215, %v213, %v337
    %v341 = vsel %vm215, 0, %v339
    %v342 = vmul.f32 %v340, %v340
    %v343 = vmul.f32 %v342, -0.001358992
    %v344 = vadd.f32 %v343, 0.041655596
    %v345 = vmul.f32 %v342, %v344
    %v346 = vadd.f32 %v345, -0.4999988
    %v347 = vmul.f32 %v342, %v346
    %v348 = vadd.f32 1.0, %v347
    %v349 = vmul.f32 %v340, %v340
    %v350 = vmul.f32 %v349, -0.00019511016
    %v351 = vadd.f32 %v350, 0.008332121
    %v352 = vmul.f32 %v349, %v351
    %v353 = vadd.f32 %v352, -0.16666654
    %v354 = vmul.f32 %v349, %v353
    %v355 = vadd.f32 %v354, 1.0
    %v356 = vmul.f32 %v355, %v340
    %vm357 = vweird.f32 %v213
    %v358 = vadd.s32 %v341, 3
    %v359 = vand.u32 %v358, 3
    %vm360 = vcmp.lt.s32.totalorder %v359, 2
    %vm361 = vcmp.eq.s32.totalorder %v359, 0
    %v362 = vxor.u32 %v356, 2147483648
    %v363 = vsel %vm361, %v348, %v362
    %vm364 = vcmp.eq.s32.totalorder %v359, 2
    %v365 = vxor.u32 %v348, 2147483648
    %v366 = vsel %vm364, %v365, %v356
    %v367 = vsel %vm360, %v363, %v366
    %v368 = vsel %vm357, nan, %v367
    %s369 = vtos %v368
    %v370 = vstv %s369
    %v371 = vmul.f32 %v49, %v370
    %v372 = vadd.f32 %v47, %v371
    %v373 = vld [vmem:[#allocation4] sm:$0xff]
    %v374 = vld [vmem:[#allocation4 + $0x8] sm:$0xff]
    %375 = vadd.xlane.f32.xlu0 %v373
    %v376 = vpop.xlane.xlu0 %375
    %377 = vadd.xlane.f32.xlu0 %v374
    %v378 = vpop.xlane.xlu0 %377
    %v379 = vrcp.pop 128.0
    %v380 = vmul.f32 128.0, %v379
    %v381 = vsub.f32 1.0, %v380
    %v382 = vmul.f32 %v379, %v381
    %v383 = vadd.f32 %v379, %v382
    %vm384 = vweird.f32 %v379
    %v385 = vsel %vm384, %v379, %v383
    %v386 = vmul.f32 %v376, %v385
    %v387 = vmul.f32 %v378, %v385
    %v388 = vsub.f32 %v373, %v386
    %v389 = vsub.f32 %v374, %v387
    %v390 = vmul.f32 %v388, %v388
    %v391 = vmul.f32 %v389, %v389
    %392 = vadd.xlane.f32.xlu0 %v390
    %v393 = vpop.xlane.xlu0 %392
    %394 = vadd.xlane.f32.xlu0 %v391
    %v395 = vpop.xlane.xlu0 %394
    %v396 = vmul.f32 %v393, %v385
    %v397 = vmul.f32 %v395, %v385
    %v398 = vadd.f32 %v396, 1e-12
    %v399 = vadd.f32 %v397, 1e-12
    %v400 = vrsqrt.pop %v398
    %v401 = vmul.f32 %v400, %v398
    %v402 = vmul.f32 %v401, %v400
    %v403 = vmul.f32 0.5, %v402
    %v404 = vsub.f32 1.5, %v403
    %v405 = vmul.f32 %v400, %v404
    %vm406 = vweird.f32 %v398
    %vm407 = vweird.f32 %v400
    %vm408 = vmor %vm406, %vm407
    %v409 = vsel %vm408, %v400, %v405
    %v410 = vrsqrt.pop %v399
    %v411 = vmul.f32 %v410, %v399
    %v412 = vmul.f32 %v411, %v410
    %v413 = vmul.f32 0.5, %v412
    %v414 = vsub.f32 1.5, %v413
    %v415 = vmul.f32 %v410, %v414
    %vm416 = vweird.f32 %v399
    %vm417 = vweird.f32 %v410
    %vm418 = vmor %vm416, %vm417
    %v419 = vsel %vm418, %v410, %v415
    %v420 = vmul.f32 %v388, %v409
    %v421 = vmul.f32 %v389, %v419
    %v422 = vperm.slane %v211, 0
    %v423 = vmul.f32 %v422, %v420
    %v424 = vmul.f32 %v422, %v421
    %v425 = vperm.slane %v372, 0
    %v426 = vadd.f32 %v423, %v425
    %v427 = vadd.f32 %v424, %v425
    %428 = vst [vmem:[#allocation9] sm:$0xff] %v426
    %429 = vst [vmem:[#allocation9 + $0x8] sm:$0xff] %v427
    // Predicated region
    $region18: #{tpu_custom_call.1} parent=1 // pred_check
      _
    $region19: #{tpu_custom_call.1} parent=1 // pred_check_branch
      %431 = sbr.rel (0) target = $region21
    $region20: #{tpu_custom_call.1} parent=1 // pred_region
      %433 = vsyncadd [#allocation6], 0
      %s434 = sshll.u32 [#allocation9], 4
      %s435 = int_to_ptr.vmem [resolvable:$true] %s434
      %s436 = sshll.u32 %s3, 4
      %s437 = int_to_ptr.hbm [resolvable:$true] %s436
      %442 = dma.vmem_to_hbm [thread:$0]  %s435, 256, %s437, [#allocation6], 128, 128, 8
    $region21: #{tpu_custom_call.1} parent=1 // pred_fallthru
      _
    // Predicated region
    $region22: #{tpu_custom_call.1} parent=1 // pred_check
      _
    $region23: #{tpu_custom_call.1} parent=1 // pred_check_branch
      %444 = sbr.rel (0) target = $region25
    $region24: #{tpu_custom_call.1} parent=1 // pred_region
      %446 = dma.done [#allocation6], 256
    $region25: #{tpu_custom_call.1} parent=1 // pred_fallthru
      _
    %447 = vsyncpa [#allocation5], 1
    %448 = vsyncpa [#allocation8], 1
    %449 = vsyncpa [#allocation6], 1

</llo_original>
